<compile_context>
chip_gen: v7x
topology: tpu7x:2x2x1
jax: 0.10.0
libtpu: 0.0.40
codegen_flags: <defaults>
</compile_context>

<pallas_src>
import functools

import jax
import jax.numpy as jnp
from jax import lax
from jax.experimental import pallas as pl
from jax.experimental.pallas import tpu as pltpu


# ---------------------------------------------------------------------------
# helpers
# ---------------------------------------------------------------------------
def _round_up(x, m):
    return ((x + m - 1) // m) * m


def _cdiv(a, b):
    return (a + b - 1) // b


_B_TILE_MAX = 64      # max batch rows per coord block; the VMEM plan budgets for this
_F_TILE_MAX = 2048    # cap on face tile (keeps the scatter matmul's K=3*f_tile reasonable)


def _vmem_capacity_bytes():
    # v5e/v6e: 128 MiB, v7x: 64 MiB.  Fall back to the smallest generation so the plan
    # always fits even if the trace-time query is unavailable.
    try:
        return int(pltpu.get_tpu_info().vmem_capacity_bytes)
    except Exception:
        return 64 * 1024 * 1024


def _plan_tiles(num_faces, v_pad, capacity):
    """Pick (f_tile, vmem_limit_bytes) from the target generation's VMEM capacity.

    VMEM occupants accounted for:
      verts in    : 2 x [3*Bmax, Vp] f32   (double-buffered; resident across fi)
      out (=acc)  : 2 x [3*Bmax, Vp] f32   (accumulator; resident across fi)
      g in        : 2 x [3*Ft, Vp] bf16    (double-buffered selector stream)
      g f32 cast  : 1 x [3*Ft, Vp] f32     (shared by gather + scatter matmuls)
      p scratch   : 1 x [3*Bmax, 3*Ft] f32 (packed cross products)
    """
    budget = int(capacity * 0.75)                              # compiler headroom
    fixed = 2 * 2 * (3 * _B_TILE_MAX) * v_pad * 4              # verts + out double buffers
    per_face = (2 * 3 * v_pad * 2                              # g double-buffered bf16
                + 3 * v_pad * 4                                # f32 cast of current g tile
                + 3 * _B_TILE_MAX * 3 * 4)                     # p scratch columns
    avail = max(budget - fixed, 128 * per_face)
    f_tile = (avail // per_face // 128) * 128
    f_tile = int(max(128, min(f_tile, _F_TILE_MAX, _round_up(num_faces, 128))))
    vmem_limit = int(min(capacity - (4 << 20), capacity * 0.9))
    return f_tile, vmem_limit


def _choose_b_tile(batch, prefer_split):
    """Sublane-aligned batch tile; optionally split so >=2 tiles exist (v7x megacore)."""
    bt_full = min(_B_TILE_MAX, _round_up(max(batch, 1), 8))
    if prefer_split and batch >= 16:
        return min(bt_full, _round_up(_cdiv(batch, 2), 8))
    return bt_full


def _build_corner_onehots(faces, v_pad, f_tile):
    """faces: [F, 3] int32 -> [num_ft, 3*f_tile, v_pad] bf16 one-hot selector tiles.

    Within tile ft, local row k*f_tile + f is the one-hot row of vertex
    faces[ft*f_tile + f, k] (all-zero for padded faces).  bf16 is exact for 0/1 and halves
    both the cached HBM copy and the per-step DMA bytes; the same matrix is used
    (contracted over Vp) for the gather and (as written) for the scatter-add.
    """
    faces = jnp.asarray(faces, dtype=jnp.int32)
    if faces.ndim == 3:                      # accept [1, F, 3] like the torch buffer
        faces = faces[0]
    num_faces = faces.shape[0]
    f_pad = _round_up(num_faces, f_tile)
    num_ft = f_pad // f_tile
    faces_p = jnp.full((f_pad, 3), -1, dtype=jnp.int32).at[:num_faces].set(faces)
    onehot = jax.nn.one_hot(faces_p.T, v_pad, dtype=jnp.bfloat16)     # [3, f_pad, v_pad]
    onehot = onehot.reshape(3, num_ft, f_tile, v_pad)
    onehot = onehot.transpose(1, 0, 2, 3).reshape(num_ft, 3 * f_tile, v_pad)
    return onehot


# ---------------------------------------------------------------------------
# Pallas kernel: vertex normals for one (batch tile, face tile) grid point
# ---------------------------------------------------------------------------
def _vertex_normals_kernel(verts_ref, g_ref, out_ref, p_ref, *, b_tile, f_tile):
    # verts_ref: (1, 3*b_tile, v_pad) f32   rows = coord*b_tile + local_batch
    # g_ref:     (1, 3*f_tile, v_pad) bf16  rows = corner*f_tile + local_face (0/1 selector)
    # out_ref:   (1, 3*b_tile, v_pad) f32   accumulator (block index constant over fi) and
    #                                       final normalized normals (written at last fi)
    # p_ref:     (3*b_tile, 3*f_tile) f32   scratch for the packed cross products
    fi = pl.program_id(1)

    @pl.when(fi == 0)
    def _():
        out_ref[0] = jnp.zeros(out_ref.shape[1:], out_ref.dtype)

    verts = verts_ref[0]                                # [3B, Vp] f32
    g = g_ref[0].astype(jnp.float32)                    # bf16 in HBM/VMEM; VPU cast, exact 0/1

    # One MXU matmul gathers all 3 corners x 3 coords x b_tile batches:
    # [3B, Vp] x [3F, Vp] contracted over Vp -> [3B, 3F]
    gathered = lax.dot_general(
        verts, g, (((1,), (1,)), ((), ())), preferred_element_type=jnp.float32)

    def corner(k):
        cols = slice(k * f_tile, (k + 1) * f_tile)
        return (gathered[0 * b_tile:1 * b_tile, cols],
                gathered[1 * b_tile:2 * b_tile, cols],
                gathered[2 * b_tile:3 * b_tile, cols])

    v0 = corner(0)
    v1 = corner(1)
    v2 = corner(2)

    def sub(a, b):
        return (a[0] - b[0], a[1] - b[1], a[2] - b[2])

    def cross(a, b):
        ax, ay, az = a
        bx, by, bz = b
        return (ay * bz - az * by, az * bx - ax * bz, ax * by - ay * bx)

    # Same cross products / scatter targets as util.vertex_normals:
    c0 = cross(sub(v1, v0), sub(v2, v0))     # scattered via corner-0 one-hot
    c1 = cross(sub(v2, v1), sub(v0, v1))     # scattered via corner-1 one-hot
    c2 = cross(sub(v0, v2), sub(v1, v2))     # scattered via corner-2 one-hot
    crosses = (c0, c1, c2)

    # Pack into [3B, 3F] via direct slice stores (no concatenates): row block = coord,
    # column block k must line up with the corner-k rows of g.
    for k in range(3):
        for c in range(3):
            p_ref[c * b_tile:(c + 1) * b_tile, k * f_tile:(k + 1) * f_tile] = crosses[k][c]

    # Single MXU matmul does all three scatter-adds and the face sum at once.
    out_ref[0] = out_ref[0] + jnp.dot(p_ref[...], g, preferred_element_type=jnp.float32)

    @pl.when(fi == pl.num_programs(1) - 1)
    def _():
        acc = out_ref[0]
        nx = acc[0 * b_tile:1 * b_tile]
        ny = acc[1 * b_tile:2 * b_tile]
        nz = acc[2 * b_tile:3 * b_tile]
        sq = nx * nx + ny * ny + nz * nz                     # per-row, no cross-sublane reduce
        inv = lax.rsqrt(jnp.maximum(sq, 1e-12))              # == 1/max(||n||, 1e-6), EUP slot
        out_ref[0, 0 * b_tile:1 * b_tile] = nx * inv
        out_ref[0, 1 * b_tile:2 * b_tile] = ny * inv
        out_ref[0, 2 * b_tile:3 * b_tile] = nz * inv


@functools.partial(jax.jit, static_argnums=(2, 3, 4))
def _vertex_normals_impl(vertices, g, b_tile, f_tile, vmem_limit_bytes):
    """vertices: [B, V, 3] f32; g: [num_ft, 3*f_tile, v_pad] bf16 -> [B, V, 3] normals."""
    B, V, _ = vertices.shape
    num_ft, _, v_pad = g.shape
    b_pad = _round_up(B, b_tile)
    num_bt = b_pad // b_tile

    v = vertices.astype(jnp.float32)
    v = jnp.pad(v, ((0, b_pad - B), (0, v_pad - V), (0, 0)))
    # -> [num_bt, 3*b_tile, v_pad], local row = coord * b_tile + batch
    v = v.reshape(num_bt, b_tile, v_pad, 3).transpose(0, 3, 1, 2)
    v = v.reshape(num_bt, 3 * b_tile, v_pad)

    kernel = functools.partial(_vertex_normals_kernel, b_tile=b_tile, f_tile=f_tile)
    out = pl.pallas_call(
        kernel,
        out_shape=jax.ShapeDtypeStruct((num_bt, 3 * b_tile, v_pad), jnp.float32),
        grid_spec=pltpu.PrefetchScalarGridSpec(
            num_scalar_prefetch=0,
            grid=(num_bt, num_ft),
            in_specs=[
                pl.BlockSpec((1, 3 * b_tile, v_pad), lambda bi, fi: (bi, 0, 0)),
                pl.BlockSpec((1, 3 * f_tile, v_pad), lambda bi, fi: (fi, 0, 0)),
            ],
            out_specs=pl.BlockSpec((1, 3 * b_tile, v_pad), lambda bi, fi: (bi, 0, 0)),
            scratch_shapes=[pltpu.VMEM((3 * b_tile, 3 * f_tile), jnp.float32)],
        ),
        compiler_params=pltpu.CompilerParams(
            dimension_semantics=("parallel", "arbitrary"),
            vmem_limit_bytes=int(vmem_limit_bytes),
        ),
    )(v, g)

    out = out.reshape(num_bt, 3, b_tile, v_pad).transpose(0, 2, 3, 1)
    out = out.reshape(b_pad, v_pad, 3)
    return out[:B, :V, :]


# ---------------------------------------------------------------------------
# SRenderY wrapper (synthetic mesh instead of load_obj; no checkpoint/obj IO)
# ---------------------------------------------------------------------------
class SRenderY:
    def __init__(self, image_size, faces, num_vertices, uv_size=256):
        # TODO(synk): load_obj / uv coords / dense_faces / SH constants / rasterizers are
        # never used by the (fake) forward output; only the face topology matters here.
        self.image_size = image_size
        self.uv_size = uv_size
        self.faces = jnp.asarray(faces, dtype=jnp.int32)            # [F, 3]
        self.num_vertices = int(num_vertices)
        self._v_pad = _round_up(self.num_vertices, 128)

        capacity = _vmem_capacity_bytes()
        # <=64 MiB VMEM is the v7x signature (2 TensorCores per chip): prefer splitting the
        # batch into >=2 tiles so the "parallel" grid axis feeds both cores.
        self._prefer_batch_split = capacity <= (64 * 1024 * 1024)
        self._f_tile, self._vmem_limit = _plan_tiles(
            int(self.faces.shape[0]), self._v_pad, capacity)

        # Cached at init (depends only on the static mesh topology, like the registered
        # `faces` buffer): avoids re-emitting ~3*F*V values of one-hots every forward.
        self._g = _build_corner_onehots(self.faces, self._v_pad, self._f_tile)

    def forward(self, vertices, transformed_vertices, albedos,
                lights=None, h=None, w=None, light_type='point', background=None):
        # The reference mutates transformed_vertices[..., 2] += 10 and builds face_* /
        # attributes tensors, but none of that reaches the returned dict (rasterizer stub
        # returns None), so only the vertex normals are computed.
        b = int(vertices.shape[0])
        b_tile = _choose_b_tile(b, self._prefer_batch_split)
        normals = _vertex_normals_impl(vertices.astype(jnp.float32), self._g,
                                       b_tile, self._f_tile, self._vmem_limit)
        return {'normals': normals}

    __call__ = forward


# ---------------------------------------------------------------------------
# Pure-JAX reference for validation
# ---------------------------------------------------------------------------
def vertex_normals_ref(vertices, faces):
    B, V, _ = vertices.shape

    def per_batch(v):
        vf = v[faces]                                           # [F, 3, 3]
        c1 = jnp.cross(vf[:, 2] - vf[:, 1], vf[:, 0] - vf[:, 1])
        c2 = jnp.cross(vf[:, 0] - vf[:, 2], vf[:, 1] - vf[:, 2])
        c0 = jnp.cross(vf[:, 1] - vf[:, 0], vf[:, 2] - vf[:, 0])
        acc = jnp.zeros((V, 3), jnp.float32)
        acc = acc.at[faces[:, 1]].add(c1)
        acc = acc.at[faces[:, 2]].add(c2)
        acc = acc.at[faces[:, 0]].add(c0)
        n = jnp.maximum(jnp.linalg.norm(acc, axis=-1, keepdims=True), 1e-6)
        return acc / n

    return jax.vmap(per_batch)(vertices.astype(jnp.float32))


if __name__ == "__main__":
    key = jax.random.PRNGKey(0)
    k_v, k_tv, k_alb, k_f = jax.random.split(key, 4)

    B, V, F = 2, 64, 96          # small synthetic mesh
    H = Wd = 16                  # uv map spatial size

    vertices = jax.random.normal(k_v, (B, V, 3), dtype=jnp.float32)
    transformed_vertices = jax.random.normal(k_tv, (B, V, 3), dtype=jnp.float32)
    albedos = jax.random.uniform(k_alb, (B, 3, H, Wd), dtype=jnp.float32)   # NCHW, unused
    faces = jax.random.randint(k_f, (F, 3), 0, V, dtype=jnp.int32)

    renderer = SRenderY(image_size=H, faces=faces, num_vertices=V, uv_size=H)
    out = renderer(vertices, transformed_vertices, albedos)
    normals = jax.block_until_ready(out['normals'])

    ref = jax.block_until_ready(vertex_normals_ref(vertices, faces))
    assert normals.shape == (B, V, 3)
    assert jnp.allclose(normals, ref, atol=1e-3, rtol=1e-3), (
        float(jnp.max(jnp.abs(normals - ref))))

    print("KERNEL_OK")
</pallas_src>

<mosaic_0001>
module attributes {stable_mosaic.version = 11 : i64} {
  func.func @_vertex_normals_kernel(%arg0: i32, %arg1: i32, %arg2: memref<1x24x128xf32, #tpu.memory_space<vmem>>, %arg3: memref<1x384x128xbf16, #tpu.memory_space<vmem>>, %arg4: memref<1x24x128xf32, #tpu.memory_space<vmem>>, %arg5: memref<24x384xf32, #tpu.memory_space<vmem>>) attributes {dimension_semantics = [#tpu.dimension_semantics<parallel>, #tpu.dimension_semantics<arbitrary>], iteration_bounds = array<i64: 1, 1>, scalar_prefetch = 0 : i64, scratch_operands = 1 : i64, tpu.core_type = #tpu.core_type<tc>, window_params = [{transform_indices = @transform_0, window_bounds = array<i64: 1, 24, 128>}, {transform_indices = @transform_1, window_bounds = array<i64: 1, 384, 128>}, {transform_indices = @transform_2, window_bounds = array<i64: 1, 24, 128>}]} {
    %c0_i32 = arith.constant 0 : i32
    %0 = arith.cmpi eq, %arg1, %c0_i32 : i32
    %1 = arith.extui %0 : i1 to i32
    %c0_i32_0 = arith.constant 0 : i32
    %2 = arith.cmpi ne, %1, %c0_i32_0 : i32
    scf.if %2 {
      %cst_31 = arith.constant 0.000000e+00 : f32
      %83 = vector.broadcast %cst_31 : f32 to vector<24x128xf32>
      %c0_32 = arith.constant 0 : index
      %c0_33 = arith.constant 0 : index
      %c0_34 = arith.constant 0 : index
      %84 = vector.load %arg4[%c0_32, %c0_33, %c0_34] : memref<1x24x128xf32, #tpu.memory_space<vmem>>, vector<1x24x128xf32>
      %85 = vector.shape_cast %84 : vector<1x24x128xf32> to vector<24x128xf32>
      %86 = vector.shape_cast %83 : vector<24x128xf32> to vector<1x24x128xf32>
      tpu.vector_store %arg4[%c0_32, %c0_33, %c0_34], %86 {strides = array<i32>} : memref<1x24x128xf32, #tpu.memory_space<vmem>>, vector<1x24x128xf32>,
    } else {
    }
    %c0 = arith.constant 0 : index
    %c0_1 = arith.constant 0 : index
    %c0_2 = arith.constant 0 : index
    %3 = vector.load %arg2[%c0, %c0_1, %c0_2] : memref<1x24x128xf32, #tpu.memory_space<vmem>>, vector<1x24x128xf32>
    %4 = vector.shape_cast %3 : vector<1x24x128xf32> to vector<24x128xf32>
    %c0_3 = arith.constant 0 : index
    %c0_4 = arith.constant 0 : index
    %c0_5 = arith.constant 0 : index
    %5 = vector.load %arg3[%c0_3, %c0_4, %c0_5] : memref<1x384x128xbf16, #tpu.memory_space<vmem>>, vector<1x384x128xbf16>
    %6 = vector.shape_cast %5 : vector<1x384x128xbf16> to vector<384x128xbf16>
    %7 = arith.extf %6 : vector<384x128xbf16> to vector<384x128xf32>
    %cst = arith.constant dense<0.000000e+00> : vector<24x384xf32>
    %8 = tpu.matmul %4, %7, %cst {dimension_numbers = #tpu.dot_dimension_numbers<[1], [1], [0], [0], [0, 0, 1, 0], [], []>} : vector<24x128xf32>, vector<384x128xf32>, vector<24x384xf32> -> vector<24x384xf32>
    %9 = vector.extract_strided_slice %8 {offsets = [0, 0], sizes = [8, 128], strides = [1, 1]} : vector<24x384xf32> to vector<8x128xf32>
    %10 = vector.extract_strided_slice %8 {offsets = [8, 0], sizes = [8, 128], strides = [1, 1]} : vector<24x384xf32> to vector<8x128xf32>
    %11 = vector.extract_strided_slice %8 {offsets = [16, 0], sizes = [8, 128], strides = [1, 1]} : vector<24x384xf32> to vector<8x128xf32>
    %12 = vector.extract_strided_slice %8 {offsets = [0, 128], sizes = [8, 128], strides = [1, 1]} : vector<24x384xf32> to vector<8x128xf32>
    %13 = vector.extract_strided_slice %8 {offsets = [8, 128], sizes = [8, 128], strides = [1, 1]} : vector<24x384xf32> to vector<8x128xf32>
    %14 = vector.extract_strided_slice %8 {offsets = [16, 128], sizes = [8, 128], strides = [1, 1]} : vector<24x384xf32> to vector<8x128xf32>
    %15 = vector.extract_strided_slice %8 {offsets = [0, 256], sizes = [8, 128], strides = [1, 1]} : vector<24x384xf32> to vector<8x128xf32>
    %16 = vector.extract_strided_slice %8 {offsets = [8, 256], sizes = [8, 128], strides = [1, 1]} : vector<24x384xf32> to vector<8x128xf32>
    %17 = vector.extract_strided_slice %8 {offsets = [16, 256], sizes = [8, 128], strides = [1, 1]} : vector<24x384xf32> to vector<8x128xf32>
    %18 = arith.subf %12, %9 : vector<8x128xf32>
    %19 = arith.subf %13, %10 : vector<8x128xf32>
    %20 = arith.subf %14, %11 : vector<8x128xf32>
    %21 = arith.subf %15, %9 : vector<8x128xf32>
    %22 = arith.subf %16, %10 : vector<8x128xf32>
    %23 = arith.subf %17, %11 : vector<8x128xf32>
    %24 = arith.mulf %19, %23 : vector<8x128xf32>
    %25 = arith.mulf %20, %22 : vector<8x128xf32>
    %26 = arith.subf %24, %25 : vector<8x128xf32>
    %27 = arith.mulf %20, %21 : vector<8x128xf32>
    %28 = arith.mulf %18, %23 : vector<8x128xf32>
    %29 = arith.subf %27, %28 : vector<8x128xf32>
    %30 = arith.mulf %18, %22 : vector<8x128xf32>
    %31 = arith.mulf %19, %21 : vector<8x128xf32>
    %32 = arith.subf %30, %31 : vector<8x128xf32>
    %33 = arith.subf %15, %12 : vector<8x128xf32>
    %34 = arith.subf %16, %13 : vector<8x128xf32>
    %35 = arith.subf %17, %14 : vector<8x128xf32>
    %36 = arith.subf %9, %12 : vector<8x128xf32>
    %37 = arith.subf %10, %13 : vector<8x128xf32>
    %38 = arith.subf %11, %14 : vector<8x128xf32>
    %39 = arith.mulf %34, %38 : vector<8x128xf32>
    %40 = arith.mulf %35, %37 : vector<8x128xf32>
    %41 = arith.subf %39, %40 : vector<8x128xf32>
    %42 = arith.mulf %35, %36 : vector<8x128xf32>
    %43 = arith.mulf %33, %38 : vector<8x128xf32>
    %44 = arith.subf %42, %43 : vector<8x128xf32>
    %45 = arith.mulf %33, %37 : vector<8x128xf32>
    %46 = arith.mulf %34, %36 : vector<8x128xf32>
    %47 = arith.subf %45, %46 : vector<8x128xf32>
    %48 = arith.subf %9, %15 : vector<8x128xf32>
    %49 = arith.subf %10, %16 : vector<8x128xf32>
    %50 = arith.subf %11, %17 : vector<8x128xf32>
    %51 = arith.subf %12, %15 : vector<8x128xf32>
    %52 = arith.subf %13, %16 : vector<8x128xf32>
    %53 = arith.subf %14, %17 : vector<8x128xf32>
    %54 = arith.mulf %49, %53 : vector<8x128xf32>
    %55 = arith.mulf %50, %52 : vector<8x128xf32>
    %56 = arith.subf %54, %55 : vector<8x128xf32>
    %57 = arith.mulf %50, %51 : vector<8x128xf32>
    %58 = arith.mulf %48, %53 : vector<8x128xf32>
    %59 = arith.subf %57, %58 : vector<8x128xf32>
    %60 = arith.mulf %48, %52 : vector<8x128xf32>
    %61 = arith.mulf %49, %51 : vector<8x128xf32>
    %62 = arith.subf %60, %61 : vector<8x128xf32>
    %c0_6 = arith.constant 0 : index
    %c0_7 = arith.constant 0 : index
    %63 = vector.load %arg5[%c0_6, %c0_7] : memref<24x384xf32, #tpu.memory_space<vmem>>, vector<8x128xf32>
    tpu.vector_store %arg5[%c0_6, %c0_7], %26 {strides = array<i32>} : memref<24x384xf32, #tpu.memory_space<vmem>>, vector<8x128xf32>,
    %c8 = arith.constant 8 : index
    %c0_8 = arith.constant 0 : index
    %64 = vector.load %arg5[%c8, %c0_8] : memref<24x384xf32, #tpu.memory_space<vmem>>, vector<8x128xf32>
    tpu.vector_store %arg5[%c8, %c0_8], %29 {strides = array<i32>} : memref<24x384xf32, #tpu.memory_space<vmem>>, vector<8x128xf32>,
    %c16 = arith.constant 16 : index
    %c0_9 = arith.constant 0 : index
    %65 = vector.load %arg5[%c16, %c0_9] : memref<24x384xf32, #tpu.memory_space<vmem>>, vector<8x128xf32>
    tpu.vector_store %arg5[%c16, %c0_9], %32 {strides = array<i32>} : memref<24x384xf32, #tpu.memory_space<vmem>>, vector<8x128xf32>,
    %c0_10 = arith.constant 0 : index
    %c128 = arith.constant 128 : index
    %66 = vector.load %arg5[%c0_10, %c128] : memref<24x384xf32, #tpu.memory_space<vmem>>, vector<8x128xf32>
    tpu.vector_store %arg5[%c0_10, %c128], %41 {strides = array<i32>} : memref<24x384xf32, #tpu.memory_space<vmem>>, vector<8x128xf32>,
    %c8_11 = arith.constant 8 : index
    %c128_12 = arith.constant 128 : index
    %67 = vector.load %arg5[%c8_11, %c128_12] : memref<24x384xf32, #tpu.memory_space<vmem>>, vector<8x128xf32>
    tpu.vector_store %arg5[%c8_11, %c128_12], %44 {strides = array<i32>} : memref<24x384xf32, #tpu.memory_space<vmem>>, vector<8x128xf32>,
    %c16_13 = arith.constant 16 : index
    %c128_14 = arith.constant 128 : index
    %68 = vector.load %arg5[%c16_13, %c128_14] : memref<24x384xf32, #tpu.memory_space<vmem>>, vector<8x128xf32>
    tpu.vector_store %arg5[%c16_13, %c128_14], %47 {strides = array<i32>} : memref<24x384xf32, #tpu.memory_space<vmem>>, vector<8x128xf32>,
    %c0_15 = arith.constant 0 : index
    %c256 = arith.constant 256 : index
    %69 = vector.load %arg5[%c0_15, %c256] : memref<24x384xf32, #tpu.memory_space<vmem>>, vector<8x128xf32>
    tpu.vector_store %arg5[%c0_15, %c256], %56 {strides = array<i32>} : memref<24x384xf32, #tpu.memory_space<vmem>>, vector<8x128xf32>,
    %c8_16 = arith.constant 8 : index
    %c256_17 = arith.constant 256 : index
    %70 = vector.load %arg5[%c8_16, %c256_17] : memref<24x384xf32, #tpu.memory_space<vmem>>, vector<8x128xf32>
    tpu.vector_store %arg5[%c8_16, %c256_17], %59 {strides = array<i32>} : memref<24x384xf32, #tpu.memory_space<vmem>>, vector<8x128xf32>,
    %c16_18 = arith.constant 16 : index
    %c256_19 = arith.constant 256 : index
    %71 = vector.load %arg5[%c16_18, %c256_19] : memref<24x384xf32, #tpu.memory_space<vmem>>, vector<8x128xf32>
    tpu.vector_store %arg5[%c16_18, %c256_19], %62 {strides = array<i32>} : memref<24x384xf32, #tpu.memory_space<vmem>>, vector<8x128xf32>,
    %c0_20 = arith.constant 0 : index
    %c0_21 = arith.constant 0 : index
    %c0_22 = arith.constant 0 : index
    %72 = vector.load %arg4[%c0_20, %c0_21, %c0_22] : memref<1x24x128xf32, #tpu.memory_space<vmem>>, vector<1x24x128xf32>
    %73 = vector.shape_cast %72 : vector<1x24x128xf32> to vector<24x128xf32>
    %c0_23 = arith.constant 0 : index
    %c0_24 = arith.constant 0 : index
    %74 = vector.load %arg5[%c0_23, %c0_24] : memref<24x384xf32, #tpu.memory_space<vmem>>, vector<24x384xf32>
    %cst_25 = arith.constant dense<0.000000e+00> : vector<24x128xf32>
    %75 = tpu.matmul %74, %7, %cst_25 {dimension_numbers = #tpu.dot_dimension_numbers<[1], [0], [0], [1], [0, 0, 1, 1], [], []>} : vector<24x384xf32>, vector<384x128xf32>, vector<24x128xf32> -> vector<24x128xf32>
    %76 = arith.addf %73, %75 : vector<24x128xf32>
    %c0_26 = arith.constant 0 : index
    %c0_27 = arith.constant 0 : index
    %c0_28 = arith.constant 0 : index
    %77 = vector.load %arg4[%c0_26, %c0_27, %c0_28] : memref<1x24x128xf32, #tpu.memory_space<vmem>>, vector<1x24x128xf32>
    %78 = vector.shape_cast %77 : vector<1x24x128xf32> to vector<24x128xf32>
    %79 = vector.shape_cast %76 : vector<24x128xf32> to vector<1x24x128xf32>
    tpu.vector_store %arg4[%c0_26, %c0_27, %c0_28], %79 {strides = array<i32>} : memref<1x24x128xf32, #tpu.memory_space<vmem>>, vector<1x24x128xf32>,
    %c0_i32_29 = arith.constant 0 : i32
    %80 = arith.cmpi eq, %arg1, %c0_i32_29 : i32
    %81 = arith.extui %80 : i1 to i32
    %c0_i32_30 = arith.constant 0 : i32
    %82 = arith.cmpi ne, %81, %c0_i32_30 : i32
    scf.if %82 {
      %c0_31 = arith.constant 0 : index
      %c0_32 = arith.constant 0 : index
      %c0_33 = arith.constant 0 : index
      %83 = vector.load %arg4[%c0_31, %c0_32, %c0_33] : memref<1x24x128xf32, #tpu.memory_space<vmem>>, vector<1x24x128xf32>
      %84 = vector.shape_cast %83 : vector<1x24x128xf32> to vector<24x128xf32>
      %85 = vector.extract_strided_slice %84 {offsets = [0, 0], sizes = [8, 128], strides = [1, 1]} : vector<24x128xf32> to vector<8x128xf32>
      %86 = vector.extract_strided_slice %84 {offsets = [8, 0], sizes = [8, 128], strides = [1, 1]} : vector<24x128xf32> to vector<8x128xf32>
      %87 = vector.extract_strided_slice %84 {offsets = [16, 0], sizes = [8, 128], strides = [1, 1]} : vector<24x128xf32> to vector<8x128xf32>
      %88 = arith.mulf %85, %85 : vector<8x128xf32>
      %89 = arith.mulf %86, %86 : vector<8x128xf32>
      %90 = arith.addf %88, %89 : vector<8x128xf32>
      %91 = arith.mulf %87, %87 : vector<8x128xf32>
      %92 = arith.addf %90, %91 : vector<8x128xf32>
      %cst_34 = arith.constant 9.99999996E-13 : f32
      %93 = vector.broadcast %cst_34 : f32 to vector<8x128xf32>
      %94 = arith.maximumf %92, %93 : vector<8x128xf32>
      %95 = math.rsqrt %94 : vector<8x128xf32>
      %96 = arith.mulf %85, %95 : vector<8x128xf32>
      %c0_35 = arith.constant 0 : index
      %c0_36 = arith.constant 0 : index
      %c0_37 = arith.constant 0 : index
      %97 = vector.load %arg4[%c0_35, %c0_36, %c0_37] : memref<1x24x128xf32, #tpu.memory_space<vmem>>, vector<1x8x128xf32>
      %98 = vector.shape_cast %97 : vector<1x8x128xf32> to vector<8x128xf32>
      %99 = vector.shape_cast %96 : vector<8x128xf32> to vector<1x8x128xf32>
      tpu.vector_store %arg4[%c0_35, %c0_36, %c0_37], %99 {strides = array<i32>} : memref<1x24x128xf32, #tpu.memory_space<vmem>>, vector<1x8x128xf32>,
      %100 = arith.mulf %86, %95 : vector<8x128xf32>
      %c0_38 = arith.constant 0 : index
      %c8_39 = arith.constant 8 : index
      %c0_40 = arith.constant 0 : index
      %101 = vector.load %arg4[%c0_38, %c8_39, %c0_40] : memref<1x24x128xf32, #tpu.memory_space<vmem>>, vector<1x8x128xf32>
      %102 = vector.shape_cast %101 : vector<1x8x128xf32> to vector<8x128xf32>
      %103 = vector.shape_cast %100 : vector<8x128xf32> to vector<1x8x128xf32>
      tpu.vector_store %arg4[%c0_38, %c8_39, %c0_40], %103 {strides = array<i32>} : memref<1x24x128xf32, #tpu.memory_space<vmem>>, vector<1x8x128xf32>,
      %104 = arith.mulf %87, %95 : vector<8x128xf32>
      %c0_41 = arith.constant 0 : index
      %c16_42 = arith.constant 16 : index
      %c0_43 = arith.constant 0 : index
      %105 = vector.load %arg4[%c0_41, %c16_42, %c0_43] : memref<1x24x128xf32, #tpu.memory_space<vmem>>, vector<1x8x128xf32>
      %106 = vector.shape_cast %105 : vector<1x8x128xf32> to vector<8x128xf32>
      %107 = vector.shape_cast %104 : vector<8x128xf32> to vector<1x8x128xf32>
      tpu.vector_store %arg4[%c0_41, %c16_42, %c0_43], %107 {strides = array<i32>} : memref<1x24x128xf32, #tpu.memory_space<vmem>>, vector<1x8x128xf32>,
    } else {
    }
    return
  }
  func.func @transform_0(%arg0: i32, %arg1: i32) -> (i32, i32, i32) {
    %c0_i32 = arith.constant 0 : i32
    %c0_i32_0 = arith.constant 0 : i32
    %c0_i32_1 = arith.constant 0 : i32
    return %arg0, %c0_i32, %c0_i32_0 : i32, i32, i32
  }
  func.func @transform_1(%arg0: i32, %arg1: i32) -> (i32, i32, i32) {
    %c0_i32 = arith.constant 0 : i32
    %c0_i32_0 = arith.constant 0 : i32
    %c0_i32_1 = arith.constant 0 : i32
    return %arg1, %c0_i32, %c0_i32_0 : i32, i32, i32
  }
  func.func @transform_2(%arg0: i32, %arg1: i32) -> (i32, i32, i32) {
    %c0_i32 = arith.constant 0 : i32
    %c0_i32_0 = arith.constant 0 : i32
    %c0_i32_1 = arith.constant 0 : i32
    return %arg0, %c0_i32, %c0_i32_0 : i32, i32, i32
  }
}

</mosaic_0001>

<llo_original>
// kernel: _vertex_normals_impl.1
$region0: #{_vertex_normals_impl.1}
  #allocation0 [shape = 'u32[]', space=smem, size = 0x4, offset = 0x4, fixed_abs, tag = 'smem constant byte address 0x4 - core index']
  #allocation1 [shape = 'u32[144,128]{1,0:T(1,128)}', space=vmem, size = 0x12000, scoped, tag = 'internal scratch']
  #allocation2 [shape = 'f32[24,384]{1,0:T(8,128)}', space=vmem, size = 0x9000, scoped, tag = 'scratch operand']
  %s0 = inlined_call_operand.vmem [shape: f32[1,24,128], index: 0, kind: input, shape index: {}]
  %s1 = inlined_call_operand.hbm [shape: bf16[1,384,128], index: 1, kind: input, shape index: {}]
  %s2 = inlined_call_operand.vmem [shape: f32[1,24,128], index: 2, kind: output, shape index: {}]
  %s3 = sld [smem:[#allocation0]]
  $region30: #{_vertex_normals_impl.1} parent=0
    _
  %s5 = ssub.s32 1, %s3
  %s6 = scalar_select 0, %s5, %s3
  $region1: #{_vertex_normals_impl.1} parent=0
    #allocation3 [shape = 'u8[98304]{0}', space=vmem, size = 0x18000, scoped, tag = 'input window, operand 1, single buffered']
    #allocation4 [shape = 's32[1]{0}', space=sflag, size = 0x4, scoped, tag = 'scoped memory for _vertex_normals_impl.1']
    %7 = vsyncpa [#allocation4], 0
    // Predicated region
    $region2: #{_vertex_normals_impl.1} parent=1 // pred_check
      _
    $region3: #{_vertex_normals_impl.1} parent=1 // pred_check_branch
      %9 = sbr.rel (0) target = $region5
    $region4: #{_vertex_normals_impl.1} parent=1 // pred_region
      _
    $region5: #{_vertex_normals_impl.1} parent=1 // pred_fallthru
      _
    // Predicated region
    $region6: #{_vertex_normals_impl.1} parent=1 // pred_check
      _
    $region7: #{_vertex_normals_impl.1} parent=1 // pred_check_branch
      %11 = sbr.rel (0) target = $region9
    $region8: #{_vertex_normals_impl.1} parent=1 // pred_region
      %s13 = ssub.s32 3072, 3072
      %14 = vsyncadd [#allocation4], %s13
      %s15 = sshll.u32 [#allocation3], 4
      %s16 = int_to_ptr.vmem [resolvable:$true] %s15
      %21 = dma.hbm_to_vmem [thread:$0]  %s1, 3072, %s16, [#allocation4], 64, 64, 4
    $region9: #{_vertex_normals_impl.1} parent=1 // pred_fallthru
      _
    // Predicated region
    $region10: #{_vertex_normals_impl.1} parent=1 // pred_check
      _
    $region11: #{_vertex_normals_impl.1} parent=1 // pred_check_branch
      %23 = sbr.rel (0) target = $region13
    $region12: #{_vertex_normals_impl.1} parent=1 // pred_region
      %24 = dma.done [#allocation4], 3072
    $region13: #{_vertex_normals_impl.1} parent=1 // pred_fallthru
      _
    %p25 = scmp.eq.s32.totalorder 0, 0
    // Predicated region
    $region14: #{_vertex_normals_impl.1} parent=1 // pred_check
      %p26 = pneg %p25
    $region15: #{_vertex_normals_impl.1} parent=1 // pred_check_branch
      %28 = sbr.rel (%p26) target = $region17
    $region16: #{_vertex_normals_impl.1} parent=1 // pred_region
      %29 = vst [vmem:[%s2] sm:$0xff] 0.0
      %30 = vst [vmem:[%s2 + $0x8] sm:$0xff] 0.0
      %31 = vst [vmem:[%s2 + $0x10] sm:$0xff] 0.0
    $region17: #{_vertex_normals_impl.1} parent=1 // pred_fallthru
      _
    %v32 = vld [vmem:[%s0] sm:$0xff]
    %v33 = vld [vmem:[%s0 + $0x8] sm:$0xff]
    %v34 = vld [vmem:[%s0 + $0x10] sm:$0xff]
    %v35 = vld [vmem:[#allocation3] sm:$0xf]
    %v36 = vld [vmem:[#allocation3 + $0x4] sm:$0xf]
    %v37 = vld [vmem:[#allocation3 + $0x8] sm:$0xf]
    %v38 = vld [vmem:[#allocation3 + $0xc] sm:$0xf]
    %v39 = vld [vmem:[#allocation3 + $0x10] sm:$0xf]
    %v40 = vld [vmem:[#allocation3 + $0x14] sm:$0xf]
    %v41 = vld [vmem:[#allocation3 + $0x18] sm:$0xf]
    %v42 = vld [vmem:[#allocation3 + $0x1c] sm:$0xf]
    %v43 = vld [vmem:[#allocation3 + $0x20] sm:$0xf]
    %v44 = vld [vmem:[#allocation3 + $0x24] sm:$0xf]
    %v45 = vld [vmem:[#allocation3 + $0x28] sm:$0xf]
    %v46 = vld [vmem:[#allocation3 + $0x2c] sm:$0xf]
    %v47 = vld [vmem:[#allocation3 + $0x30] sm:$0xf]
    %v48 = vld [vmem:[#allocation3 + $0x34] sm:$0xf]
    %v49 = vld [vmem:[#allocation3 + $0x38] sm:$0xf]
    %v50 = vld [vmem:[#allocation3 + $0x3c] sm:$0xf]
    %v51 = vld [vmem:[#allocation3 + $0x40] sm:$0xf]
    %v52 = vld [vmem:[#allocation3 + $0x44] sm:$0xf]
    %v53 = vld [vmem:[#allocation3 + $0x48] sm:$0xf]
    %v54 = vld [vmem:[#allocation3 + $0x4c] sm:$0xf]
    %v55 = vld [vmem:[#allocation3 + $0x50] sm:$0xf]
    %v56 = vld [vmem:[#allocation3 + $0x54] sm:$0xf]
    %v57 = vld [vmem:[#allocation3 + $0x58] sm:$0xf]
    %v58 = vld [vmem:[#allocation3 + $0x5c] sm:$0xf]
    %v59 = vld [vmem:[#allocation3 + $0x60] sm:$0xf]
    %v60 = vld [vmem:[#allocation3 + $0x64] sm:$0xf]
    %v61 = vld [vmem:[#allocation3 + $0x68] sm:$0xf]
    %v62 = vld [vmem:[#allocation3 + $0x6c] sm:$0xf]
    %v63 = vld [vmem:[#allocation3 + $0x70] sm:$0xf]
    %v64 = vld [vmem:[#allocation3 + $0x74] sm:$0xf]
    %v65 = vld [vmem:[#allocation3 + $0x78] sm:$0xf]
    %v66 = vld [vmem:[#allocation3 + $0x7c] sm:$0xf]
    %v67 = vld [vmem:[#allocation3 + $0x80] sm:$0xf]
    %v68 = vld [vmem:[#allocation3 + $0x84] sm:$0xf]
    %v69 = vld [vmem:[#allocation3 + $0x88] sm:$0xf]
    %v70 = vld [vmem:[#allocation3 + $0x8c] sm:$0xf]
    %v71 = vld [vmem:[#allocation3 + $0x90] sm:$0xf]
    %v72 = vld [vmem:[#allocation3 + $0x94] sm:$0xf]
    %v73 = vld [vmem:[#allocation3 + $0x98] sm:$0xf]
    %v74 = vld [vmem:[#allocation3 + $0x9c] sm:$0xf]
    %v75 = vld [vmem:[#allocation3 + $0xa0] sm:$0xf]
    %v76 = vld [vmem:[#allocation3 + $0xa4] sm:$0xf]
    %v77 = vld [vmem:[#allocation3 + $0xa8] sm:$0xf]
    %v78 = vld [vmem:[#allocation3 + $0xac] sm:$0xf]
    %v79 = vld [vmem:[#allocation3 + $0xb0] sm:$0xf]
    %v80 = vld [vmem:[#allocation3 + $0xb4] sm:$0xf]
    %v81 = vld [vmem:[#allocation3 + $0xb8] sm:$0xf]
    %v82 = vld [vmem:[#allocation3 + $0xbc] sm:$0xf]
    %v83 = vunpack.c.l.bf16 %v35
    %v84 = vunpack.c.l.bf16 %v36
    %v85 = vunpack.c.l.bf16 %v37
    %v86 = vunpack.c.l.bf16 %v38
    %v87 = vunpack.c.l.bf16 %v39
    %v88 = vunpack.c.l.bf16 %v40
    %v89 = vunpack.c.l.bf16 %v41
    %v90 = vunpack.c.l.bf16 %v42
    %v91 = vunpack.c.l.bf16 %v43
    %v92 = vunpack.c.l.bf16 %v44
    %v93 = vunpack.c.l.bf16 %v45
    %v94 = vunpack.c.l.bf16 %v46
    %v95 = vunpack.c.l.bf16 %v47
    %v96 = vunpack.c.l.bf16 %v48
    %v97 = vunpack.c.l.bf16 %v49
    %v98 = vunpack.c.l.bf16 %v50
    %v99 = vunpack.c.l.bf16 %v51
    %v100 = vunpack.c.l.bf16 %v52
    %v101 = vunpack.c.l.bf16 %v53
    %v102 = vunpack.c.l.bf16 %v54
    %v103 = vunpack.c.l.bf16 %v55
    %v104 = vunpack.c.l.bf16 %v56
    %v105 = vunpack.c.l.bf16 %v57
    %v106 = vunpack.c.l.bf16 %v58
    %v107 = vunpack.c.l.bf16 %v59
    %v108 = vunpack.c.l.bf16 %v60
    %v109 = vunpack.c.l.bf16 %v61
    %v110 = vunpack.c.l.bf16 %v62
    %v111 = vunpack.c.l.bf16 %v63
    %v112 = vunpack.c.l.bf16 %v64
    %v113 = vunpack.c.l.bf16 %v65
    %v114 = vunpack.c.l.bf16 %v66
    %v115 = vunpack.c.l.bf16 %v67
    %v116 = vunpack.c.l.bf16 %v68
    %v117 = vunpack.c.l.bf16 %v69
    %v118 = vunpack.c.l.bf16 %v70
    %v119 = vunpack.c.l.bf16 %v71
    %v120 = vunpack.c.l.bf16 %v72
    %v121 = vunpack.c.l.bf16 %v73
    %v122 = vunpack.c.l.bf16 %v74
    %v123 = vunpack.c.l.bf16 %v75
    %v124 = vunpack.c.l.bf16 %v76
    %v125 = vunpack.c.l.bf16 %v77
    %v126 = vunpack.c.l.bf16 %v78
    %v127 = vunpack.c.l.bf16 %v79
    %v128 = vunpack.c.l.bf16 %v80
    %v129 = vunpack.c.l.bf16 %v81
    %v130 = vunpack.c.l.bf16 %v82
    %131 = vmatprep.subr.mxu0 0.0
    %132 = vmatpush1.xpose.msra.mxu0 %v83
    %133 = vmatprep.subr.mxu0 0.0
    %134 = vmatpush1.xpose.msra.mxu0 %v84
    %135 = vmatprep.subr.mxu0 0.0
    %136 = vmatpush1.xpose.msra.mxu0 %v85
    %137 = vmatprep.subr.mxu0 0.0
    %138 = vmatpush1.xpose.msra.mxu0 %v86
    %139 = vmatprep.subr.mxu0 0.0
    %140 = vmatpush1.xpose.msra.mxu0 %v87
    %141 = vmatprep.subr.mxu0 0.0
    %142 = vmatpush1.xpose.msra.mxu0 %v88
    %143 = vmatprep.subr.mxu0 0.0
    %144 = vmatpush1.xpose.msra.mxu0 %v89
    %145 = vmatprep.subr.mxu0 0.0
    %146 = vmatpush1.xpose.msra.mxu0 %v90
    %147 = vmatprep.subr.mxu0 0.0
    %148 = vmatpush1.xpose.msra.mxu0 %v91
    %149 = vmatprep.subr.mxu0 0.0
    %150 = vmatpush1.xpose.msra.mxu0 %v92
    %151 = vmatprep.subr.mxu0 0.0
    %152 = vmatpush1.xpose.msra.mxu0 %v93
    %153 = vmatprep.subr.mxu0 0.0
    %154 = vmatpush1.xpose.msra.mxu0 %v94
    %155 = vmatprep.subr.mxu0 0.0
    %156 = vmatpush1.xpose.msra.mxu0 %v95
    %157 = vmatprep.subr.mxu0 0.0
    %158 = vmatpush1.xpose.msra.mxu0 %v96
    %159 = vmatprep.subr.mxu0 0.0
    %160 = vmatpush1.xpose.msra.mxu0 %v97
    %161 = vmatprep.subr.mxu0 0.0
    %162 = vmatpush1.xpose.msra.mxu0 %v98
    %163 = vmatprep.subr.mxu0 0.0
    %164 = vmatpush1.xpose.msra.mxu0 %v99
    %165 = vmatprep.subr.mxu0 0.0
    %166 = vmatpush1.xpose.msra.mxu0 %v100
    %167 = vmatprep.subr.mxu0 0.0
    %168 = vmatpush1.xpose.msra.mxu0 %v101
    %169 = vmatprep.subr.mxu0 0.0
    %170 = vmatpush1.xpose.msra.mxu0 %v102
    %171 = vmatprep.subr.mxu0 0.0
    %172 = vmatpush1.xpose.msra.mxu0 %v103
    %173 = vmatprep.subr.mxu0 0.0
    %174 = vmatpush1.xpose.msra.mxu0 %v104
    %175 = vmatprep.subr.mxu0 0.0
    %176 = vmatpush1.xpose.msra.mxu0 %v105
    %177 = vmatprep.subr.mxu0 0.0
    %178 = vmatpush1.xpose.msra.mxu0 %v106
    %179 = vmatprep.subr.mxu0 0.0
    %180 = vmatpush1.xpose.msra.mxu0 %v107
    %181 = vmatprep.subr.mxu0 0.0
    %182 = vmatpush1.xpose.msra.mxu0 %v108
    %183 = vmatprep.subr.mxu0 0.0
    %184 = vmatpush1.xpose.msra.mxu0 %v109
    %185 = vmatprep.subr.mxu0 0.0
    %186 = vmatpush1.xpose.msra.mxu0 %v110
    %187 = vmatprep.subr.mxu0 0.0
    %188 = vmatpush1.xpose.msra.mxu0 %v111
    %189 = vmatprep.subr.mxu0 0.0
    %190 = vmatpush1.xpose.msra.mxu0 %v112
    %191 = vmatprep.subr.mxu0 0.0
    %192 = vmatpush1.xpose.msra.mxu0 %v113
    %193 = vmatprep.subr.mxu0 0.0
    %194 = vmatpush1.xpose.msra.mxu0 %v114
    %195 = vmatprep.mubr.f32.mxu0 0.0
    %196 = vmatmul.mubr.f32.gmra.mrb[0].mxu0 %v32
    %v197 = vpop.f32.mrb[0].mxu0
    %v198 = vadd.f32 0.0, %v197
    %v199 = vpop.f32.mrb[0].mxu0
    %v200 = vadd.f32 0.0, %v199
    %201 = vmatprep.mubr.f32.mxu0 0.0
    %202 = vmatmul.mubr.f32.gmra.mrb[0].mxu0 %v33
    %v203 = vpop.f32.mrb[0].mxu0
    %v204 = vadd.f32 0.0, %v203
    %v205 = vpop.f32.mrb[0].mxu0
    %v206 = vadd.f32 0.0, %v205
    %207 = vmatprep.mubr.f32.mxu0 0.0
    %208 = vmatmul.mubr.f32.gmra.mrb[0].mxu0 %v34
    %v209 = vpop.f32.mrb[0].mxu0
    %v210 = vadd.f32 0.0, %v209
    %v211 = vpop.f32.mrb[0].mxu0
    %v212 = vadd.f32 0.0, %v211
    %213 = vdwg.mxu0
    %214 = vmatprep.subr.mxu0 0.0
    %215 = vmatpush1.xpose.msra.mxu0 %v115
    %216 = vmatprep.subr.mxu0 0.0
    %217 = vmatpush1.xpose.msra.mxu0 %v116
    %218 = vmatprep.subr.mxu0 0.0
    %219 = vmatpush1.xpose.msra.mxu0 %v117
    %220 = vmatprep.subr.mxu0 0.0
    %221 = vmatpush1.xpose.msra.mxu0 %v118
    %222 = vmatprep.subr.mxu0 0.0
    %223 = vmatpush1.xpose.msra.mxu0 %v119
    %224 = vmatprep.subr.mxu0 0.0
    %225 = vmatpush1.xpose.msra.mxu0 %v120
    %226 = vmatprep.subr.mxu0 0.0
    %227 = vmatpush1.xpose.msra.mxu0 %v121
    %228 = vmatprep.subr.mxu0 0.0
    %229 = vmatpush1.xpose.msra.mxu0 %v122
    %230 = vmatprep.subr.mxu0 0.0
    %231 = vmatpush1.xpose.msra.mxu0 %v123
    %232 = vmatprep.subr.mxu0 0.0
    %233 = vmatpush1.xpose.msra.mxu0 %v124
    %234 = vmatprep.subr.mxu0 0.0
    %235 = vmatpush1.xpose.msra.mxu0 %v125
    %236 = vmatprep.subr.mxu0 0.0
    %237 = vmatpush1.xpose.msra.mxu0 %v126
    %238 = vmatprep.subr.mxu0 0.0
    %239 = vmatpush1.xpose.msra.mxu0 %v127
    %240 = vmatprep.subr.mxu0 0.0
    %241 = vmatpush1.xpose.msra.mxu0 %v128
    %242 = vmatprep.subr.mxu0 0.0
    %243 = vmatpush1.xpose.msra.mxu0 %v129
    %244 = vmatprep.subr.mxu0 0.0
    %245 = vmatpush1.xpose.msra.mxu0 %v130
    %246 = vmatprep.subr.mxu0 0.0
    %247 = vmatpush1.xpose.msra.mxu0 0.0
    %248 = vmatprep.subr.mxu0 0.0
    %249 = vmatpush1.xpose.msra.mxu0 0.0
    %250 = vmatprep.subr.mxu0 0.0
    %251 = vmatpush1.xpose.msra.mxu0 0.0
    %252 = vmatprep.subr.mxu0 0.0
    %253 = vmatpush1.xpose.msra.mxu0 0.0
    %254 = vmatprep.subr.mxu0 0.0
    %255 = vmatpush1.xpose.msra.mxu0 0.0
    %256 = vmatprep.subr.mxu0 0.0
    %257 = vmatpush1.xpose.msra.mxu0 0.0
    %258 = vmatprep.subr.mxu0 0.0
    %259 = vmatpush1.xpose.msra.mxu0 0.0
    %260 = vmatprep.subr.mxu0 0.0
    %261 = vmatpush1.xpose.msra.mxu0 0.0
    %262 = vmatprep.subr.mxu0 0.0
    %263 = vmatpush1.xpose.msra.mxu0 0.0
    %264 = vmatprep.subr.mxu0 0.0
    %265 = vmatpush1.xpose.msra.mxu0 0.0
    %266 = vmatprep.subr.mxu0 0.0
    %267 = vmatpush1.xpose.msra.mxu0 0.0
    %268 = vmatprep.subr.mxu0 0.0
    %269 = vmatpush1.xpose.msra.mxu0 0.0
    %270 = vmatprep.subr.mxu0 0.0
    %271 = vmatpush1.xpose.msra.mxu0 0.0
    %272 = vmatprep.subr.mxu0 0.0
    %273 = vmatpush1.xpose.msra.mxu0 0.0
    %274 = vmatprep.subr.mxu0 0.0
    %275 = vmatpush1.xpose.msra.mxu0 0.0
    %276 = vmatprep.subr.mxu0 0.0
    %277 = vmatpush1.xpose.msra.mxu0 0.0
    %278 = vmatprep.mubr.f32.mxu0 0.0
    %279 = vmatmul.mubr.f32.gmra.mrb[0].mxu0 %v32
    %v280 = vpop.f32.mrb[0].mxu0
    %v281 = vadd.f32 0.0, %v280
    %v282 = vpop.f32.mrb[0].mxu0
    %283 = vmatprep.mubr.f32.mxu0 0.0
    %284 = vmatmul.mubr.f32.gmra.mrb[0].mxu0 %v33
    %v285 = vpop.f32.mrb[0].mxu0
    %v286 = vadd.f32 0.0, %v285
    %v287 = vpop.f32.mrb[0].mxu0
    %288 = vmatprep.mubr.f32.mxu0 0.0
    %289 = vmatmul.mubr.f32.gmra.mrb[0].mxu0 %v34
    %v290 = vpop.f32.mrb[0].mxu0
    %v291 = vadd.f32 0.0, %v290
    %v292 = vpop.f32.mrb[0].mxu0
    %293 = vdwg.mxu0
    %v294 = vsub.f32 %v200, %v198
    %v295 = vsub.f32 %v206, %v204
    %v296 = vsub.f32 %v212, %v210
    %v297 = vsub.f32 %v281, %v198
    %v298 = vsub.f32 %v286, %v204
    %v299 = vsub.f32 %v291, %v210
    %v300 = vmul.f32 %v295, %v299
    %v301 = vmul.f32 %v296, %v298
    %v302 = vsub.f32 %v300, %v301
    %v303 = vmul.f32 %v296, %v297
    %v304 = vmul.f32 %v294, %v299
    %v305 = vsub.f32 %v303, %v304
    %v306 = vmul.f32 %v294, %v298
    %v307 = vmul.f32 %v295, %v297
    %v308 = vsub.f32 %v306, %v307
    %v309 = vsub.f32 %v281, %v200
    %v310 = vsub.f32 %v286, %v206
    %v311 = vsub.f32 %v291, %v212
    %v312 = vsub.f32 %v198, %v200
    %v313 = vsub.f32 %v204, %v206
    %v314 = vsub.f32 %v210, %v212
    %v315 = vmul.f32 %v310, %v314
    %v316 = vmul.f32 %v311, %v313
    %v317 = vsub.f32 %v315, %v316
    %v318 = vmul.f32 %v311, %v312
    %v319 = vmul.f32 %v309, %v314
    %v320 = vsub.f32 %v318, %v319
    %v321 = vmul.f32 %v309, %v313
    %v322 = vmul.f32 %v310, %v312
    %v323 = vsub.f32 %v321, %v322
    %v324 = vsub.f32 %v198, %v281
    %v325 = vsub.f32 %v204, %v286
    %v326 = vsub.f32 %v210, %v291
    %v327 = vsub.f32 %v200, %v281
    %v328 = vsub.f32 %v206, %v286
    %v329 = vsub.f32 %v212, %v291
    %v330 = vmul.f32 %v325, %v329
    %v331 = vmul.f32 %v326, %v328
    %v332 = vsub.f32 %v330, %v331
    %v333 = vmul.f32 %v326, %v327
    %v334 = vmul.f32 %v324, %v329
    %v335 = vsub.f32 %v333, %v334
    %v336 = vmul.f32 %v324, %v328
    %v337 = vmul.f32 %v325, %v327
    %v338 = vsub.f32 %v336, %v337
    %339 = vst [vmem:[#allocation2] sm:$0xff] %v302
    %340 = vst [vmem:[#allocation2 + $0x18] sm:$0xff] %v305
    %341 = vst [vmem:[#allocation2 + $0x30] sm:$0xff] %v308
    %342 = vst [vmem:[#allocation2 + $0x8] sm:$0xff] %v317
    %343 = vst [vmem:[#allocation2 + $0x20] sm:$0xff] %v320
    %344 = vst [vmem:[#allocation2 + $0x38] sm:$0xff] %v323
    %345 = vst [vmem:[#allocation2 + $0x10] sm:$0xff] %v332
    %346 = vst [vmem:[#allocation2 + $0x28] sm:$0xff] %v335
    %347 = vst [vmem:[#allocation2 + $0x40] sm:$0xff] %v338
    %v348 = vld [vmem:[%s2] sm:$0xff]
    %v349 = vld [vmem:[%s2 + $0x8] sm:$0xff]
    %v350 = vld [vmem:[%s2 + $0x10] sm:$0xff]
    %v351 = vld [vmem:[#allocation2] sm:$0xff]
    %v352 = vld [vmem:[#allocation2 + $0x8] sm:$0xff]
    %v353 = vld [vmem:[#allocation2 + $0x10] sm:$0xff]
    %v354 = vld [vmem:[#allocation2 + $0x18] sm:$0xff]
    %v355 = vld [vmem:[#allocation2 + $0x20] sm:$0xff]
    %v356 = vld [vmem:[#allocation2 + $0x28] sm:$0xff]
    %v357 = vld [vmem:[#allocation2 + $0x30] sm:$0xff]
    %v358 = vld [vmem:[#allocation2 + $0x38] sm:$0xff]
    %v359 = vld [vmem:[#allocation2 + $0x40] sm:$0xff]
    %360 = vmatprep.subr.mxu0 0.0
    %361 = vmatpush1.msra.mxu0 %v83
    %362 = vmatprep.subr.mxu0 0.0
    %363 = vmatpush1.msra.mxu0 %v84
    %364 = vmatprep.subr.mxu0 0.0
    %365 = vmatpush1.msra.mxu0 %v85
    %366 = vmatprep.subr.mxu0 0.0
    %367 = vmatpush1.msra.mxu0 %v86
    %368 = vmatprep.subr.mxu0 0.0
    %369 = vmatpush1.msra.mxu0 %v87
    %370 = vmatprep.subr.mxu0 0.0
    %371 = vmatpush1.msra.mxu0 %v88
    %372 = vmatprep.subr.mxu0 0.0
    %373 = vmatpush1.msra.mxu0 %v89
    %374 = vmatprep.subr.mxu0 0.0
    %375 = vmatpush1.msra.mxu0 %v90
    %376 = vmatprep.subr.mxu0 0.0
    %377 = vmatpush1.msra.mxu0 %v91
    %378 = vmatprep.subr.mxu0 0.0
    %379 = vmatpush1.msra.mxu0 %v92
    %380 = vmatprep.subr.mxu0 0.0
    %381 = vmatpush1.msra.mxu0 %v93
    %382 = vmatprep.subr.mxu0 0.0
    %383 = vmatpush1.msra.mxu0 %v94
    %384 = vmatprep.subr.mxu0 0.0
    %385 = vmatpush1.msra.mxu0 %v95
    %386 = vmatprep.subr.mxu0 0.0
    %387 = vmatpush1.msra.mxu0 %v96
    %388 = vmatprep.subr.mxu0 0.0
    %389 = vmatpush1.msra.mxu0 %v97
    %390 = vmatprep.subr.mxu0 0.0
    %391 = vmatpush1.msra.mxu0 %v98
    %392 = vmatprep.subr.mxu0 0.0
    %393 = vmatpush1.msra.mxu0 %v99
    %394 = vmatprep.subr.mxu0 0.0
    %395 = vmatpush1.msra.mxu0 %v100
    %396 = vmatprep.subr.mxu0 0.0
    %397 = vmatpush1.msra.mxu0 %v101
    %398 = vmatprep.subr.mxu0 0.0
    %399 = vmatpush1.msra.mxu0 %v102
    %400 = vmatprep.subr.mxu0 0.0
    %401 = vmatpush1.msra.mxu0 %v103
    %402 = vmatprep.subr.mxu0 0.0
    %403 = vmatpush1.msra.mxu0 %v104
    %404 = vmatprep.subr.mxu0 0.0
    %405 = vmatpush1.msra.mxu0 %v105
    %406 = vmatprep.subr.mxu0 0.0
    %407 = vmatpush1.msra.mxu0 %v106
    %408 = vmatprep.subr.mxu0 0.0
    %409 = vmatpush1.msra.mxu0 %v107
    %410 = vmatprep.subr.mxu0 0.0
    %411 = vmatpush1.msra.mxu0 %v108
    %412 = vmatprep.subr.mxu0 0.0
    %413 = vmatpush1.msra.mxu0 %v109
    %414 = vmatprep.subr.mxu0 0.0
    %415 = vmatpush1.msra.mxu0 %v110
    %416 = vmatprep.subr.mxu0 0.0
    %417 = vmatpush1.msra.mxu0 %v111
    %418 = vmatprep.subr.mxu0 0.0
    %419 = vmatpush1.msra.mxu0 %v112
    %420 = vmatprep.subr.mxu0 0.0
    %421 = vmatpush1.msra.mxu0 %v113
    %422 = vmatprep.subr.mxu0 0.0
    %423 = vmatpush1.msra.mxu0 %v114
    %424 = vmatprep.mubr.f32.mxu0 %v352
    %425 = vmatmul.mubr.f32.gmra.mrb[0].mxu0 %v351
    %v426 = vpop.f32.mrb[0].mxu0
    %v427 = vadd.f32 0.0, %v426
    %v428 = vpop.f32.mrb[0].mxu0
    %429 = vmatprep.mubr.f32.mxu0 %v355
    %430 = vmatmul.mubr.f32.gmra.mrb[0].mxu0 %v354
    %v431 = vpop.f32.mrb[0].mxu0
    %v432 = vadd.f32 0.0, %v431
    %v433 = vpop.f32.mrb[0].mxu0
    %434 = vmatprep.mubr.f32.mxu0 %v358
    %435 = vmatmul.mubr.f32.gmra.mrb[0].mxu0 %v357
    %v436 = vpop.f32.mrb[0].mxu0
    %v437 = vadd.f32 0.0, %v436
    %v438 = vpop.f32.mrb[0].mxu0
    %439 = vdwg.mxu0
    %440 = vmatprep.subr.mxu0 0.0
    %441 = vmatpush1.msra.mxu0 %v115
    %442 = vmatprep.subr.mxu0 0.0
    %443 = vmatpush1.msra.mxu0 %v116
    %444 = vmatprep.subr.mxu0 0.0
    %445 = vmatpush1.msra.mxu0 %v117
    %446 = vmatprep.subr.mxu0 0.0
    %447 = vmatpush1.msra.mxu0 %v118
    %448 = vmatprep.subr.mxu0 0.0
    %449 = vmatpush1.msra.mxu0 %v119
    %450 = vmatprep.subr.mxu0 0.0
    %451 = vmatpush1.msra.mxu0 %v120
    %452 = vmatprep.subr.mxu0 0.0
    %453 = vmatpush1.msra.mxu0 %v121
    %454 = vmatprep.subr.mxu0 0.0
    %455 = vmatpush1.msra.mxu0 %v122
    %456 = vmatprep.subr.mxu0 0.0
    %457 = vmatpush1.msra.mxu0 %v123
    %458 = vmatprep.subr.mxu0 0.0
    %459 = vmatpush1.msra.mxu0 %v124
    %460 = vmatprep.subr.mxu0 0.0
    %461 = vmatpush1.msra.mxu0 %v125
    %462 = vmatprep.subr.mxu0 0.0
    %463 = vmatpush1.msra.mxu0 %v126
    %464 = vmatprep.subr.mxu0 0.0
    %465 = vmatpush1.msra.mxu0 %v127
    %466 = vmatprep.subr.mxu0 0.0
    %467 = vmatpush1.msra.mxu0 %v128
    %468 = vmatprep.subr.mxu0 0.0
    %469 = vmatpush1.msra.mxu0 %v129
    %470 = vmatprep.subr.mxu0 0.0
    %471 = vmatpush1.msra.mxu0 %v130
    %472 = vmatprep.subr.mxu0 0.0
    %473 = vmatpush1.msra.mxu0 0.0
    %474 = vmatprep.subr.mxu0 0.0
    %475 = vmatpush1.msra.mxu0 0.0
    %476 = vmatprep.subr.mxu0 0.0
    %477 = vmatpush1.msra.mxu0 0.0
    %478 = vmatprep.subr.mxu0 0.0
    %479 = vmatpush1.msra.mxu0 0.0
    %480 = vmatprep.subr.mxu0 0.0
    %481 = vmatpush1.msra.mxu0 0.0
    %482 = vmatprep.subr.mxu0 0.0
    %483 = vmatpush1.msra.mxu0 0.0
    %484 = vmatprep.subr.mxu0 0.0
    %485 = vmatpush1.msra.mxu0 0.0
    %486 = vmatprep.subr.mxu0 0.0
    %487 = vmatpush1.msra.mxu0 0.0
    %488 = vmatprep.subr.mxu0 0.0
    %489 = vmatpush1.msra.mxu0 0.0
    %490 = vmatprep.subr.mxu0 0.0
    %491 = vmatpush1.msra.mxu0 0.0
    %492 = vmatprep.subr.mxu0 0.0
    %493 = vmatpush1.msra.mxu0 0.0
    %494 = vmatprep.subr.mxu0 0.0
    %495 = vmatpush1.msra.mxu0 0.0
    %496 = vmatprep.subr.mxu0 0.0
    %497 = vmatpush1.msra.mxu0 0.0
    %498 = vmatprep.subr.mxu0 0.0
    %499 = vmatpush1.msra.mxu0 0.0
    %500 = vmatprep.subr.mxu0 0.0
    %501 = vmatpush1.msra.mxu0 0.0
    %502 = vmatprep.subr.mxu0 0.0
    %503 = vmatpush1.msra.mxu0 0.0
    %504 = vmatprep.mubr.f32.mxu0 0.0
    %505 = vmatmul.mubr.f32.gmra.mrb[0].mxu0 %v353
    %v506 = vpop.f32.mrb[0].mxu0
    %v507 = vadd.f32 %v427, %v506
    %v508 = vpop.f32.mrb[0].mxu0
    %509 = vmatprep.mubr.f32.mxu0 0.0
    %510 = vmatmul.mubr.f32.gmra.mrb[0].mxu0 %v356
    %v511 = vpop.f32.mrb[0].mxu0
    %v512 = vadd.f32 %v432, %v511
    %v513 = vpop.f32.mrb[0].mxu0
    %514 = vmatprep.mubr.f32.mxu0 0.0
    %515 = vmatmul.mubr.f32.gmra.mrb[0].mxu0 %v359
    %v516 = vpop.f32.mrb[0].mxu0
    %v517 = vadd.f32 %v437, %v516
    %v518 = vpop.f32.mrb[0].mxu0
    %519 = vdwg.mxu0
    %v520 = vadd.f32 %v348, %v507
    %v521 = vadd.f32 %v349, %v512
    %v522 = vadd.f32 %v350, %v517
    %523 = vst [vmem:[%s2] sm:$0xff] %v520
    %524 = vst [vmem:[%s2 + $0x8] sm:$0xff] %v521
    %525 = vst [vmem:[%s2 + $0x10] sm:$0xff] %v522
    // Predicated region
    $region18: #{_vertex_normals_impl.1} parent=1 // pred_check
      %p526 = pneg %p25
    $region19: #{_vertex_normals_impl.1} parent=1 // pred_check_branch
      %528 = sbr.rel (%p526) target = $region21
    $region20: #{_vertex_normals_impl.1} parent=1 // pred_region
      %v529 = vld [vmem:[%s2] sm:$0xff]
      %v530 = vld [vmem:[%s2 + $0x8] sm:$0xff]
      %v531 = vld [vmem:[%s2 + $0x10] sm:$0xff]
      %v532 = vmul.f32 %v529, %v529
      %v533 = vmul.f32 %v530, %v530
      %v534 = vadd.f32 %v532, %v533
      %v535 = vmul.f32 %v531, %v531
      %v536 = vadd.f32 %v534, %v535
      %v537 = vmax.f32 %v536, 1e-12
      %v538 = vrsqrt.pop %v537
      %v539 = vmul.f32 %v529, %v538
      %540 = vst [vmem:[%s2] sm:$0xff] %v539
      %v541 = vmul.f32 %v530, %v538
      %542 = vst [vmem:[%s2 + $0x8] sm:$0xff] %v541
      %v543 = vmul.f32 %v531, %v538
      %544 = vst [vmem:[%s2 + $0x10] sm:$0xff] %v543
    $region21: #{_vertex_normals_impl.1} parent=1 // pred_fallthru
      _
    // Predicated region
    $region22: #{_vertex_normals_impl.1} parent=1 // pred_check
      _
    $region23: #{_vertex_normals_impl.1} parent=1 // pred_check_branch
      %546 = sbr.rel (0) target = $region25
    $region24: #{_vertex_normals_impl.1} parent=1 // pred_region
      _
    $region25: #{_vertex_normals_impl.1} parent=1 // pred_fallthru
      _
    // Predicated region
    $region26: #{_vertex_normals_impl.1} parent=1 // pred_check
      _
    $region27: #{_vertex_normals_impl.1} parent=1 // pred_check_branch
      %548 = sbr.rel (0) target = $region29
    $region28: #{_vertex_normals_impl.1} parent=1 // pred_region
      _
    $region29: #{_vertex_normals_impl.1} parent=1 // pred_fallthru
      _
    %549 = vsyncpa [#allocation4], 1

</llo_original>
